<compile_context>
chip_gen: v5e
topology: v5e:2x2
jax: 0.10.0
libtpu: 0.0.40
codegen_flags: <defaults>
</compile_context>

<pallas_src>
import numpy as np
import jax
import jax.numpy as jnp
from jax.experimental import pallas as pl
from jax.experimental.pallas import tpu as pltpu

EPS = 1e-5   # BatchNorm1d default eps
PG = 3       # padding of the kernel-7 conditioning convs


# ----------------------------- Pallas kernel ------------------------------ #
def _make_kernel(B, L, C):
    N = B * L
    taps_c1 = [-1, 0, 1]    # main conv 1: kernel 3, dilation 1, padding 1
    taps_c2 = [-3, 0, 3]    # main conv 2: kernel 3, dilation 3, padding 3

    def kernel(x_ref, zs_ref, wgb_ref, w1_ref, w2_ref, bn_ref, o_ref):
        x = x_ref[...]                      # (C, N) f32, lane-dense
        bn = bn_ref[...]                    # (C, 4): bnw1, bnb1, bnw2, bnb2
        col = lambda j: bn[:, j:j + 1]      # (C, 1)

        # ---- per-offset boundary masks, built once and reused ------------- #
        # within-segment position of every flattened column (L is 128 here,
        # so the modulo is a cheap AND; precompute host-side for odd L)
        l_idx = jax.lax.broadcasted_iota(jnp.int32, (1, N), 1) % L
        masks = {o: ((l_idx + o) >= 0) & ((l_idx + o) < L)
                 for o in set(taps_c1 + taps_c2) if o != 0}
        ones_row = jnp.ones((1, N), jnp.float32)     # bias row for the convs

        def shift_tap(y, o):
            # y[:, n+o] via an XLU lane rotation; lanes whose source fell
            # outside [0, L) of their own batch segment (incl. the wrapped
            # lanes) are zeroed by the precomputed mask (select, not multiply).
            if o == 0:
                return y
            r = pltpu.roll(y, (-o) % N, axis=1)
            return jnp.where(masks[o], r, 0.0)

        def batchnorm(v, jw, jb):
            # training-mode BatchNorm1d, single reduction pass, folded into
            # one per-channel scale + shift
            inv_n = 1.0 / N
            s1 = jnp.sum(v, axis=1, keepdims=True)
            s2 = jnp.sum(v * v, axis=1, keepdims=True)
            mean = s1 * inv_n
            var = jnp.maximum(s2 * inv_n - mean * mean, 0.0)
            a = col(jw) * jax.lax.rsqrt(var + EPS)
            return v * a + (col(jb) - mean * a)

        def cond_affine(stage):
            # gamma/beta for ONE stage: (2C, KG*M+1) x (KG*M+1, N); biases are
            # the last lhs column (zs carries the matching ones row).
            w = wgb_ref[2 * C * stage: 2 * C * (stage + 1), :]
            gb = jnp.dot(w, zs_ref[...], preferred_element_type=jnp.float32)
            return gb[:C], gb[C:]

        def conv(y, w_ref, taps):
            # one dot over the stacked shifted views of y plus a ones row:
            # (C, K*C+1) x (K*C+1, N); conv bias folded into the last column.
            ys = jnp.concatenate([shift_tap(y, o) for o in taps] + [ones_row],
                                 axis=0)
            return jnp.dot(w_ref[...], ys, preferred_element_type=jnp.float32)

        # ------------------------------ stage 1 ---------------------------- #
        gamma, beta = cond_affine(0)
        xn = batchnorm(x, 0, 1)
        y = jnp.maximum(gamma * xn + beta, 0.0)
        xt = conv(y, w1_ref, taps_c1)

        # ------------------------------ stage 2 ---------------------------- #
        gamma, beta = cond_affine(1)
        xn = batchnorm(xt, 2, 3)
        y = jnp.maximum(gamma * xn + beta, 0.0)
        xt = conv(y, w2_ref, taps_c2)

        o_ref[...] = (xt + x).astype(o_ref.dtype)

    return kernel


# ------------------------------- wrapper ----------------------------------- #
def resblock_forward(x, z, params):
    """x: (B, C, L) float32, z: (B, n_moras, Lc) float32, Lc <= L."""
    B, C, L = x.shape
    M, Lc = z.shape[1], z.shape[2]
    N = B * L
    K = params["w1"].shape[0]
    KG = params["wg1"].shape[0]
    # lane-dense output is the biggest single store-path lever
    assert N % 128 == 0, "TODO(synk): zero-pad N (with masked BN stats) for arbitrary L"

    # lane-dense (C, B*L) main input
    x2 = jnp.transpose(x, (1, 0, 2)).reshape(C, N).astype(jnp.float32)

    # condition: F.pad to length L, then build the stacked shifted views
    # (KG*M, N) in the wrapper + a ones row for the folded biases.
    zp = jnp.pad(z, ((0, 0), (0, 0), (0, L - Lc))).astype(jnp.float32)
    zpp = jnp.pad(zp, ((0, 0), (0, 0), (PG, PG)))          # (B, M, L + 2*PG)
    views = []
    for k in range(KG):                                    # tap k -> offset k-PG
        vk = zpp[:, :, k:k + L]                            # (B, M, L)
        views.append(jnp.transpose(vk, (1, 0, 2)).reshape(M, N))
    zs = jnp.concatenate(views + [jnp.ones((1, N), jnp.float32)],
                         axis=0)                           # (KG*M + 1, N)

    def pack_conv(w, b):
        # (K, Cout, Cin), (Cout,) -> matmul lhs (Cout, K*Cin + 1), bias last col
        lhs = jnp.transpose(w, (1, 0, 2)).reshape(w.shape[1], -1)
        return jnp.concatenate([lhs, b[:, None]], axis=1).astype(jnp.float32)

    wgb = jnp.concatenate([pack_conv(params["wg1"], params["bg1"]),
                           pack_conv(params["wb1"], params["bb1"]),
                           pack_conv(params["wg2"], params["bg2"]),
                           pack_conv(params["wb2"], params["bb2"])],
                          axis=0)                          # (4C, KG*M + 1)
    w1p = pack_conv(params["w1"], params["b1"])            # (C, K*C + 1)
    w2p = pack_conv(params["w2"], params["b2"])            # (C, K*C + 1)
    bn = jnp.stack([params["bnw1"], params["bnb1"],
                    params["bnw2"], params["bnb2"]],
                   axis=1).astype(jnp.float32)             # (C, 4)

    kernel = _make_kernel(B, L, C)
    inputs = [x2, zs, wgb, w1p, w2p, bn]

    out2 = pl.pallas_call(
        kernel,
        out_shape=jax.ShapeDtypeStruct((C, N), jnp.float32),
        in_specs=[pl.BlockSpec(memory_space=pltpu.MemorySpace.VMEM)
                  for _ in inputs],
        out_specs=pl.BlockSpec(memory_space=pltpu.MemorySpace.VMEM),
    )(*inputs)
    return jnp.transpose(out2.reshape(C, B, L), (1, 0, 2))


# ------------------------- deterministic parameters ------------------------ #
def init_params(key, C, M, K=3, KG=7):
    keys = jax.random.split(key, 12)
    std = 0.01  # init_weights: normal(0, 0.01) for conv weights
    p = {}
    p["w1"] = std * jax.random.normal(keys[0], (K, C, C), jnp.float32)
    p["b1"] = 0.05 * jax.random.normal(keys[1], (C,), jnp.float32)
    p["w2"] = std * jax.random.normal(keys[2], (K, C, C), jnp.float32)
    p["b2"] = 0.05 * jax.random.normal(keys[3], (C,), jnp.float32)
    p["bnw1"] = jnp.ones((C,), jnp.float32)
    p["bnb1"] = jnp.zeros((C,), jnp.float32)
    p["bnw2"] = jnp.ones((C,), jnp.float32)
    p["bnb2"] = jnp.zeros((C,), jnp.float32)
    p["wg1"] = std * jax.random.normal(keys[4], (KG, C, M), jnp.float32)
    p["bg1"] = 0.05 * jax.random.normal(keys[5], (C,), jnp.float32)
    p["wb1"] = std * jax.random.normal(keys[6], (KG, C, M), jnp.float32)
    p["bb1"] = 0.05 * jax.random.normal(keys[7], (C,), jnp.float32)
    p["wg2"] = std * jax.random.normal(keys[8], (KG, C, M), jnp.float32)
    p["bg2"] = 0.05 * jax.random.normal(keys[9], (C,), jnp.float32)
    p["wb2"] = std * jax.random.normal(keys[10], (KG, C, M), jnp.float32)
    p["bb2"] = 0.05 * jax.random.normal(keys[11], (C,), jnp.float32)
    return p


# ------------------------- pure-JAX reference (NCL) ------------------------ #
def conv1d_ref(x, w, b, dilation, pad):
    B, Cin, L = x.shape
    K = w.shape[0]
    xp = jnp.pad(x, ((0, 0), (0, 0), (pad, pad)))
    out = jnp.zeros((B, w.shape[1], L), jnp.float32)
    for k in range(K):
        out = out + jnp.einsum('oc,bcl->bol', w[k],
                               xp[:, :, k * dilation:k * dilation + L])
    return out + b.reshape(1, -1, 1)


def batchnorm_ref(x, w, b):
    mean = jnp.mean(x, axis=(0, 2), keepdims=True)
    var = jnp.mean((x - mean) ** 2, axis=(0, 2), keepdims=True)
    return ((x - mean) * jax.lax.rsqrt(var + EPS) * w.reshape(1, -1, 1)
            + b.reshape(1, -1, 1))


def resblock_ref(x, z, p):
    B, C, L = x.shape
    pc = jnp.pad(z, ((0, 0), (0, 0), (0, L - z.shape[-1])))
    xt = x
    stages = [(p["w1"], p["b1"], 1, 1, p["bnw1"], p["bnb1"],
               p["wg1"], p["bg1"], p["wb1"], p["bb1"]),
              (p["w2"], p["b2"], 3, 3, p["bnw2"], p["bnb2"],
               p["wg2"], p["bg2"], p["wb2"], p["bb2"])]
    for (w, b, d, pd, bnw, bnb, wg, bg, wb_, bb) in stages:
        xn = batchnorm_ref(xt, bnw, bnb)
        gamma = conv1d_ref(pc, wg, bg, 1, 3)
        beta = conv1d_ref(pc, wb_, bb, 1, 3)
        xt = jax.nn.relu(gamma * xn + beta)
        xt = conv1d_ref(xt, w, b, d, pd)
    return xt + x


# ---------------------------------- main ----------------------------------- #
if __name__ == "__main__":
    B, C, L = 2, 16, 128      # batch, channels, sequence length
    M, Lc = 8, 96             # n_moras, condition length (< L, exercises F.pad)

    key = jax.random.PRNGKey(0)
    kx, kz, kp = jax.random.split(key, 3)
    x = jax.random.normal(kx, (B, C, L), jnp.float32)
    z = jax.random.normal(kz, (B, M, Lc), jnp.float32)
    params = init_params(kp, C, M)

    out = resblock_forward(x, z, params)
    out = jax.block_until_ready(out)

    ref = resblock_ref(x, z, params)
    assert out.shape == (B, C, L)
    np.testing.assert_allclose(np.asarray(out), np.asarray(ref),
                               atol=1e-4, rtol=1e-3)
    print("KERNEL_OK")
</pallas_src>

<mosaic_0001>
module attributes {stable_mosaic.version = 11 : i64} {
  func.func @kernel(%arg0: memref<16x256xf32, #tpu.memory_space<vmem>>, %arg1: memref<57x256xf32, #tpu.memory_space<vmem>>, %arg2: memref<64x57xf32, #tpu.memory_space<vmem>>, %arg3: memref<16x49xf32, #tpu.memory_space<vmem>>, %arg4: memref<16x49xf32, #tpu.memory_space<vmem>>, %arg5: memref<16x4xf32, #tpu.memory_space<vmem>>, %arg6: memref<16x256xf32, #tpu.memory_space<vmem>>) attributes {dimension_semantics = [], scalar_prefetch = 0 : i64, scratch_operands = 0 : i64, tpu.core_type = #tpu.core_type<tc>} {
    %c0 = arith.constant 0 : index
    %c0_0 = arith.constant 0 : index
    %0 = vector.load %arg0[%c0, %c0_0] : memref<16x256xf32, #tpu.memory_space<vmem>>, vector<16x256xf32>
    %c0_1 = arith.constant 0 : index
    %c0_2 = arith.constant 0 : index
    %1 = vector.load %arg5[%c0_1, %c0_2] : memref<16x4xf32, #tpu.memory_space<vmem>>, vector<16x4xf32>
    %2 = tpu.iota {dimensions = array<i32: 1>} : vector<1x256xi32>
    %c128_i32 = arith.constant 128 : i32
    %c0_i32 = arith.constant 0 : i32
    %3 = arith.cmpi eq, %c128_i32, %c0_i32 : i32
    %c1_i32 = arith.constant 1 : i32
    %4 = arith.select %3, %c1_i32, %c128_i32 : i32
    %5 = vector.broadcast %4 : i32 to vector<1x256xi32>
    %6 = arith.remsi %2, %5 : vector<1x256xi32>
    %c0_i32_3 = arith.constant 0 : i32
    %7 = vector.broadcast %c0_i32_3 : i32 to vector<1x256xi32>
    %8 = arith.cmpi ne, %6, %7 : vector<1x256xi32>
    %c0_i32_4 = arith.constant 0 : i32
    %9 = vector.broadcast %c0_i32_4 : i32 to vector<1x256xi32>
    %10 = arith.cmpi slt, %6, %9 : vector<1x256xi32>
    %c0_i32_5 = arith.constant 0 : i32
    %11 = arith.cmpi slt, %4, %c0_i32_5 : i32
    %12 = vector.broadcast %11 : i1 to vector<1x256xi1>
    %13 = vector.broadcast %12 : vector<1x256xi1> to vector<1x256xi1>
    %14 = arith.xori %10, %13 : vector<1x256xi1>
    %15 = arith.andi %14, %8 : vector<1x256xi1>
    %16 = vector.broadcast %4 : i32 to vector<1x256xi32>
    %17 = arith.addi %6, %16 : vector<1x256xi32>
    %18 = arith.select %15, %17, %6 : vector<1x256xi1>, vector<1x256xi32>
    %c1_i32_6 = arith.constant 1 : i32
    %19 = vector.broadcast %c1_i32_6 : i32 to vector<1x256xi32>
    %20 = arith.addi %18, %19 : vector<1x256xi32>
    %c0_i32_7 = arith.constant 0 : i32
    %21 = vector.broadcast %c0_i32_7 : i32 to vector<1x256xi32>
    %22 = arith.cmpi sge, %20, %21 : vector<1x256xi32>
    %c1_i32_8 = arith.constant 1 : i32
    %23 = vector.broadcast %c1_i32_8 : i32 to vector<1x256xi32>
    %24 = arith.addi %18, %23 : vector<1x256xi32>
    %c128_i32_9 = arith.constant 128 : i32
    %25 = vector.broadcast %c128_i32_9 : i32 to vector<1x256xi32>
    %26 = arith.cmpi slt, %24, %25 : vector<1x256xi32>
    %27 = arith.andi %22, %26 : vector<1x256xi1>
    %c3_i32 = arith.constant 3 : i32
    %28 = vector.broadcast %c3_i32 : i32 to vector<1x256xi32>
    %29 = arith.addi %18, %28 : vector<1x256xi32>
    %c0_i32_10 = arith.constant 0 : i32
    %30 = vector.broadcast %c0_i32_10 : i32 to vector<1x256xi32>
    %31 = arith.cmpi sge, %29, %30 : vector<1x256xi32>
    %c3_i32_11 = arith.constant 3 : i32
    %32 = vector.broadcast %c3_i32_11 : i32 to vector<1x256xi32>
    %33 = arith.addi %18, %32 : vector<1x256xi32>
    %c128_i32_12 = arith.constant 128 : i32
    %34 = vector.broadcast %c128_i32_12 : i32 to vector<1x256xi32>
    %35 = arith.cmpi slt, %33, %34 : vector<1x256xi32>
    %36 = arith.andi %31, %35 : vector<1x256xi1>
    %c-3_i32 = arith.constant -3 : i32
    %37 = vector.broadcast %c-3_i32 : i32 to vector<1x256xi32>
    %38 = arith.addi %18, %37 : vector<1x256xi32>
    %c0_i32_13 = arith.constant 0 : i32
    %39 = vector.broadcast %c0_i32_13 : i32 to vector<1x256xi32>
    %40 = arith.cmpi sge, %38, %39 : vector<1x256xi32>
    %c-3_i32_14 = arith.constant -3 : i32
    %41 = vector.broadcast %c-3_i32_14 : i32 to vector<1x256xi32>
    %42 = arith.addi %18, %41 : vector<1x256xi32>
    %c128_i32_15 = arith.constant 128 : i32
    %43 = vector.broadcast %c128_i32_15 : i32 to vector<1x256xi32>
    %44 = arith.cmpi slt, %42, %43 : vector<1x256xi32>
    %45 = arith.andi %40, %44 : vector<1x256xi1>
    %c-1_i32 = arith.constant -1 : i32
    %46 = vector.broadcast %c-1_i32 : i32 to vector<1x256xi32>
    %47 = arith.addi %18, %46 : vector<1x256xi32>
    %c0_i32_16 = arith.constant 0 : i32
    %48 = vector.broadcast %c0_i32_16 : i32 to vector<1x256xi32>
    %49 = arith.cmpi sge, %47, %48 : vector<1x256xi32>
    %c-1_i32_17 = arith.constant -1 : i32
    %50 = vector.broadcast %c-1_i32_17 : i32 to vector<1x256xi32>
    %51 = arith.addi %18, %50 : vector<1x256xi32>
    %c128_i32_18 = arith.constant 128 : i32
    %52 = vector.broadcast %c128_i32_18 : i32 to vector<1x256xi32>
    %53 = arith.cmpi slt, %51, %52 : vector<1x256xi32>
    %54 = arith.andi %49, %53 : vector<1x256xi1>
    %cst = arith.constant 1.000000e+00 : f32
    %55 = vector.broadcast %cst : f32 to vector<1x256xf32>
    %c0_19 = arith.constant 0 : index
    %c0_20 = arith.constant 0 : index
    %56 = vector.load %arg2[%c0_19, %c0_20] : memref<64x57xf32, #tpu.memory_space<vmem>>, vector<32x57xf32>
    %c0_21 = arith.constant 0 : index
    %c0_22 = arith.constant 0 : index
    %57 = vector.load %arg1[%c0_21, %c0_22] : memref<57x256xf32, #tpu.memory_space<vmem>>, vector<57x256xf32>
    %cst_23 = arith.constant dense<0.000000e+00> : vector<32x256xf32>
    %58 = tpu.matmul %56, %57, %cst_23 {dimension_numbers = #tpu.dot_dimension_numbers<[1], [0], [0], [1], [0, 0, 1, 1], [], []>} : vector<32x57xf32>, vector<57x256xf32>, vector<32x256xf32> -> vector<32x256xf32>
    %59 = vector.extract_strided_slice %58 {offsets = [0, 0], sizes = [16, 256], strides = [1, 1]} : vector<32x256xf32> to vector<16x256xf32>
    %60 = vector.extract_strided_slice %58 {offsets = [16, 0], sizes = [16, 256], strides = [1, 1]} : vector<32x256xf32> to vector<16x256xf32>
    %cst_24 = arith.constant dense<0.000000e+00> : vector<16xf32>
    %61 = vector.multi_reduction <add>, %0, %cst_24 [1] : vector<16x256xf32> to vector<16xf32>
    %62 = vector.shape_cast %61 : vector<16xf32> to vector<16x1xf32>
    %63 = arith.mulf %0, %0 : vector<16x256xf32>
    %cst_25 = arith.constant dense<0.000000e+00> : vector<16xf32>
    %64 = vector.multi_reduction <add>, %63, %cst_25 [1] : vector<16x256xf32> to vector<16xf32>
    %65 = vector.shape_cast %64 : vector<16xf32> to vector<16x1xf32>
    %cst_26 = arith.constant 3.906250e-03 : f32
    %66 = vector.broadcast %cst_26 : f32 to vector<16x1xf32>
    %67 = arith.mulf %62, %66 : vector<16x1xf32>
    %cst_27 = arith.constant 3.906250e-03 : f32
    %68 = vector.broadcast %cst_27 : f32 to vector<16x1xf32>
    %69 = arith.mulf %65, %68 : vector<16x1xf32>
    %70 = arith.mulf %67, %67 : vector<16x1xf32>
    %71 = arith.subf %69, %70 : vector<16x1xf32>
    %cst_28 = arith.constant 0.000000e+00 : f32
    %72 = vector.broadcast %cst_28 : f32 to vector<16x1xf32>
    %73 = arith.maximumf %71, %72 : vector<16x1xf32>
    %74 = vector.extract_strided_slice %1 {offsets = [0, 0], sizes = [16, 1], strides = [1, 1]} : vector<16x4xf32> to vector<16x1xf32>
    %cst_29 = arith.constant 9.99999974E-6 : f32
    %75 = vector.broadcast %cst_29 : f32 to vector<16x1xf32>
    %76 = arith.addf %73, %75 : vector<16x1xf32>
    %77 = math.rsqrt %76 : vector<16x1xf32>
    %78 = arith.mulf %74, %77 : vector<16x1xf32>
    %79 = vector.broadcast %78 : vector<16x1xf32> to vector<16x256xf32>
    %80 = arith.mulf %0, %79 : vector<16x256xf32>
    %81 = vector.extract_strided_slice %1 {offsets = [0, 1], sizes = [16, 1], strides = [1, 1]} : vector<16x4xf32> to vector<16x1xf32>
    %82 = arith.mulf %67, %78 : vector<16x1xf32>
    %83 = arith.subf %81, %82 : vector<16x1xf32>
    %84 = vector.broadcast %83 : vector<16x1xf32> to vector<16x256xf32>
    %85 = arith.addf %80, %84 : vector<16x256xf32>
    %86 = arith.mulf %59, %85 : vector<16x256xf32>
    %87 = arith.addf %86, %60 : vector<16x256xf32>
    %cst_30 = arith.constant 0.000000e+00 : f32
    %88 = vector.broadcast %cst_30 : f32 to vector<16x256xf32>
    %89 = arith.maximumf %87, %88 : vector<16x256xf32>
    %c1_i32_31 = arith.constant 1 : i32
    %90 = tpu.dynamic_rotate %89 by %c1_i32_31 dim 1 : vector<16x256xf32>, i32 -> vector<16x256xf32>
    %cst_32 = arith.constant 0.000000e+00 : f32
    %91 = vector.shape_cast %54 : vector<1x256xi1> to vector<1x256xi1>
    %92 = vector.broadcast %91 : vector<1x256xi1> to vector<16x256xi1>
    %93 = vector.broadcast %cst_32 : f32 to vector<16x256xf32>
    %94 = arith.select %92, %90, %93 : vector<16x256xi1>, vector<16x256xf32>
    %c255_i32 = arith.constant 255 : i32
    %95 = tpu.dynamic_rotate %89 by %c255_i32 dim 1 : vector<16x256xf32>, i32 -> vector<16x256xf32>
    %cst_33 = arith.constant 0.000000e+00 : f32
    %96 = vector.shape_cast %27 : vector<1x256xi1> to vector<1x256xi1>
    %97 = vector.broadcast %96 : vector<1x256xi1> to vector<16x256xi1>
    %98 = vector.broadcast %cst_33 : f32 to vector<16x256xf32>
    %99 = arith.select %97, %95, %98 : vector<16x256xi1>, vector<16x256xf32>
    %100 = tpu.concatenate %94, %89, %99, %55 in 0 : vector<16x256xf32>, vector<16x256xf32>, vector<16x256xf32>, vector<1x256xf32> -> vector<49x256xf32>
    %c0_34 = arith.constant 0 : index
    %c0_35 = arith.constant 0 : index
    %101 = vector.load %arg3[%c0_34, %c0_35] : memref<16x49xf32, #tpu.memory_space<vmem>>, vector<16x49xf32>
    %cst_36 = arith.constant dense<0.000000e+00> : vector<16x256xf32>
    %102 = tpu.matmul %101, %100, %cst_36 {dimension_numbers = #tpu.dot_dimension_numbers<[1], [0], [0], [1], [0, 0, 1, 1], [], []>} : vector<16x49xf32>, vector<49x256xf32>, vector<16x256xf32> -> vector<16x256xf32>
    %c32 = arith.constant 32 : index
    %c0_37 = arith.constant 0 : index
    %103 = vector.load %arg2[%c32, %c0_37] : memref<64x57xf32, #tpu.memory_space<vmem>>, vector<32x57xf32>
    %c0_38 = arith.constant 0 : index
    %c0_39 = arith.constant 0 : index
    %104 = vector.load %arg1[%c0_38, %c0_39] : memref<57x256xf32, #tpu.memory_space<vmem>>, vector<57x256xf32>
    %cst_40 = arith.constant dense<0.000000e+00> : vector<32x256xf32>
    %105 = tpu.matmul %103, %104, %cst_40 {dimension_numbers = #tpu.dot_dimension_numbers<[1], [0], [0], [1], [0, 0, 1, 1], [], []>} : vector<32x57xf32>, vector<57x256xf32>, vector<32x256xf32> -> vector<32x256xf32>
    %106 = vector.extract_strided_slice %105 {offsets = [0, 0], sizes = [16, 256], strides = [1, 1]} : vector<32x256xf32> to vector<16x256xf32>
    %107 = vector.extract_strided_slice %105 {offsets = [16, 0], sizes = [16, 256], strides = [1, 1]} : vector<32x256xf32> to vector<16x256xf32>
    %cst_41 = arith.constant dense<0.000000e+00> : vector<16xf32>
    %108 = vector.multi_reduction <add>, %102, %cst_41 [1] : vector<16x256xf32> to vector<16xf32>
    %109 = vector.shape_cast %108 : vector<16xf32> to vector<16x1xf32>
    %110 = arith.mulf %102, %102 : vector<16x256xf32>
    %cst_42 = arith.constant dense<0.000000e+00> : vector<16xf32>
    %111 = vector.multi_reduction <add>, %110, %cst_42 [1] : vector<16x256xf32> to vector<16xf32>
    %112 = vector.shape_cast %111 : vector<16xf32> to vector<16x1xf32>
    %cst_43 = arith.constant 3.906250e-03 : f32
    %113 = vector.broadcast %cst_43 : f32 to vector<16x1xf32>
    %114 = arith.mulf %109, %113 : vector<16x1xf32>
    %cst_44 = arith.constant 3.906250e-03 : f32
    %115 = vector.broadcast %cst_44 : f32 to vector<16x1xf32>
    %116 = arith.mulf %112, %115 : vector<16x1xf32>
    %117 = arith.mulf %114, %114 : vector<16x1xf32>
    %118 = arith.subf %116, %117 : vector<16x1xf32>
    %cst_45 = arith.constant 0.000000e+00 : f32
    %119 = vector.broadcast %cst_45 : f32 to vector<16x1xf32>
    %120 = arith.maximumf %118, %119 : vector<16x1xf32>
    %121 = vector.extract_strided_slice %1 {offsets = [0, 2], sizes = [16, 1], strides = [1, 1]} : vector<16x4xf32> to vector<16x1xf32>
    %cst_46 = arith.constant 9.99999974E-6 : f32
    %122 = vector.broadcast %cst_46 : f32 to vector<16x1xf32>
    %123 = arith.addf %120, %122 : vector<16x1xf32>
    %124 = math.rsqrt %123 : vector<16x1xf32>
    %125 = arith.mulf %121, %124 : vector<16x1xf32>
    %126 = vector.broadcast %125 : vector<16x1xf32> to vector<16x256xf32>
    %127 = arith.mulf %102, %126 : vector<16x256xf32>
    %128 = vector.extract_strided_slice %1 {offsets = [0, 3], sizes = [16, 1], strides = [1, 1]} : vector<16x4xf32> to vector<16x1xf32>
    %129 = arith.mulf %114, %125 : vector<16x1xf32>
    %130 = arith.subf %128, %129 : vector<16x1xf32>
    %131 = vector.broadcast %130 : vector<16x1xf32> to vector<16x256xf32>
    %132 = arith.addf %127, %131 : vector<16x256xf32>
    %133 = arith.mulf %106, %132 : vector<16x256xf32>
    %134 = arith.addf %133, %107 : vector<16x256xf32>
    %cst_47 = arith.constant 0.000000e+00 : f32
    %135 = vector.broadcast %cst_47 : f32 to vector<16x256xf32>
    %136 = arith.maximumf %134, %135 : vector<16x256xf32>
    %c3_i32_48 = arith.constant 3 : i32
    %137 = tpu.dynamic_rotate %136 by %c3_i32_48 dim 1 : vector<16x256xf32>, i32 -> vector<16x256xf32>
    %cst_49 = arith.constant 0.000000e+00 : f32
    %138 = vector.shape_cast %45 : vector<1x256xi1> to vector<1x256xi1>
    %139 = vector.broadcast %138 : vector<1x256xi1> to vector<16x256xi1>
    %140 = vector.broadcast %cst_49 : f32 to vector<16x256xf32>
    %141 = arith.select %139, %137, %140 : vector<16x256xi1>, vector<16x256xf32>
    %c253_i32 = arith.constant 253 : i32
    %142 = tpu.dynamic_rotate %136 by %c253_i32 dim 1 : vector<16x256xf32>, i32 -> vector<16x256xf32>
    %cst_50 = arith.constant 0.000000e+00 : f32
    %143 = vector.shape_cast %36 : vector<1x256xi1> to vector<1x256xi1>
    %144 = vector.broadcast %143 : vector<1x256xi1> to vector<16x256xi1>
    %145 = vector.broadcast %cst_50 : f32 to vector<16x256xf32>
    %146 = arith.select %144, %142, %145 : vector<16x256xi1>, vector<16x256xf32>
    %147 = tpu.concatenate %141, %136, %146, %55 in 0 : vector<16x256xf32>, vector<16x256xf32>, vector<16x256xf32>, vector<1x256xf32> -> vector<49x256xf32>
    %c0_51 = arith.constant 0 : index
    %c0_52 = arith.constant 0 : index
    %148 = vector.load %arg4[%c0_51, %c0_52] : memref<16x49xf32, #tpu.memory_space<vmem>>, vector<16x49xf32>
    %cst_53 = arith.constant dense<0.000000e+00> : vector<16x256xf32>
    %149 = tpu.matmul %148, %147, %cst_53 {dimension_numbers = #tpu.dot_dimension_numbers<[1], [0], [0], [1], [0, 0, 1, 1], [], []>} : vector<16x49xf32>, vector<49x256xf32>, vector<16x256xf32> -> vector<16x256xf32>
    %150 = arith.addf %149, %0 : vector<16x256xf32>
    %c0_54 = arith.constant 0 : index
    %c0_55 = arith.constant 0 : index
    %151 = vector.load %arg6[%c0_54, %c0_55] : memref<16x256xf32, #tpu.memory_space<vmem>>, vector<16x256xf32>
    tpu.vector_store %arg6[%c0_54, %c0_55], %150 {strides = array<i32>} : memref<16x256xf32, #tpu.memory_space<vmem>>, vector<16x256xf32>,
    return
  }
}

</mosaic_0001>

<llo_original>
// kernel: tpu_custom_call.1
$region0: #{tpu_custom_call.1}
  #allocation0 [shape = 'u32[]', space=smem, size = 0x4, offset = 0x4, fixed_abs, tag = 'smem constant byte address 0x4 - core index']
  #allocation1 [shape = 'u32[72,128]{1,0:T(1,128)}', space=vmem, size = 0x9000, scoped, tag = 'internal scratch']
  %s0 = inlined_call_operand.hbm [shape: f32[16,256], index: 0, kind: input, shape index: {}]
  %s1 = inlined_call_operand.hbm [shape: f32[57,256], index: 1, kind: input, shape index: {}]
  %s2 = inlined_call_operand.hbm [shape: f32[64,57], index: 2, kind: input, shape index: {}]
  %s3 = inlined_call_operand.vmem [shape: f32[16,49], index: 3, kind: input, shape index: {}]
  %s4 = inlined_call_operand.hbm [shape: f32[16,49], index: 4, kind: input, shape index: {}]
  %s5 = inlined_call_operand.vmem [shape: f32[16,4], index: 5, kind: input, shape index: {}]
  %s6 = inlined_call_operand.hbm [shape: f32[16,256], index: 6, kind: output, shape index: {}]
  %s7 = sld [smem:[#allocation0]]
  $region50: #{tpu_custom_call.1} parent=0
    _
  %s9 = ssub.s32 1, %s7
  %s10 = scalar_select 0, %s9, %s7
  $region1: #{tpu_custom_call.1} parent=0
    #allocation2 [shape = 'u8[16384]{0}', space=vmem, size = 0x4000, scoped, tag = 'input window, operand 0, single buffered']
    #allocation3 [shape = 's32[1]{0}', space=sflag, size = 0x4, scoped, tag = 'scoped memory for tpu_custom_call.1']
    #allocation4 [shape = 's32[1]{0}', space=sflag, size = 0x4, scoped, tag = 'scoped memory for tpu_custom_call.1']
    #allocation5 [shape = 'u8[65536]{0}', space=vmem, size = 0x10000, scoped, tag = 'input window, operand 1, single buffered']
    #allocation6 [shape = 's32[1]{0}', space=sflag, size = 0x4, scoped, tag = 'scoped memory for tpu_custom_call.1']
    #allocation7 [shape = 'u8[32768]{0}', space=vmem, size = 0x8000, scoped, tag = 'input window, operand 2, single buffered']
    #allocation8 [shape = 'u8[8192]{0}', space=vmem, size = 0x2000, scoped, tag = 'input window, operand 4, single buffered']
    #allocation9 [shape = 's32[1]{0}', space=sflag, size = 0x4, scoped, tag = 'scoped memory for tpu_custom_call.1']
    #allocation10 [shape = 'u8[16384]{0}', space=vmem, size = 0x4000, scoped, tag = 'output window, operand 0, single buffered']
    %11 = vsyncpa [#allocation3], 0
    %12 = vsyncpa [#allocation6], 0
    %13 = vsyncpa [#allocation9], 0
    %14 = vsyncpa [#allocation4], 0
    // Predicated region
    $region2: #{tpu_custom_call.1} parent=1 // pred_check
      _
    $region3: #{tpu_custom_call.1} parent=1 // pred_check_branch
      %16 = sbr.rel (0) target = $region5
    $region4: #{tpu_custom_call.1} parent=1 // pred_region
      %18 = vsyncadd [#allocation3], 0
      %s19 = sshll.u32 %s0, 4
      %s20 = int_to_ptr.hbm [resolvable:$true] %s19
      %s21 = sshll.u32 [#allocation2], 4
      %s22 = int_to_ptr.vmem [resolvable:$true] %s21
      %27 = dma.hbm_to_vmem [thread:$0]  %s20, 512, %s22, [#allocation3], 256, 256, 16
    $region5: #{tpu_custom_call.1} parent=1 // pred_fallthru
      _
    // Predicated region
    $region6: #{tpu_custom_call.1} parent=1 // pred_check
      _
    $region7: #{tpu_custom_call.1} parent=1 // pred_check_branch
      %29 = sbr.rel (0) target = $region9
    $region8: #{tpu_custom_call.1} parent=1 // pred_region
      %31 = vsyncadd [#allocation6], 0
      %s32 = sshll.u32 %s1, 4
      %s33 = int_to_ptr.hbm [resolvable:$true] %s32
      %s34 = sshll.u32 [#allocation5], 4
      %s35 = int_to_ptr.vmem [resolvable:$true] %s34
      %40 = dma.hbm_to_vmem [thread:$0]  %s33, 2048, %s35, [#allocation6], 256, 256, 16
    $region9: #{tpu_custom_call.1} parent=1 // pred_fallthru
      _
    // Predicated region
    $region10: #{tpu_custom_call.1} parent=1 // pred_check
      _
    $region11: #{tpu_custom_call.1} parent=1 // pred_check_branch
      %42 = sbr.rel (0) target = $region13
    $region12: #{tpu_custom_call.1} parent=1 // pred_region
      %44 = vsyncadd [#allocation6], 0
      %s45 = sshll.u32 %s2, 4
      %s46 = int_to_ptr.hbm [resolvable:$true] %s45
      %s47 = sshll.u32 [#allocation7], 4
      %s48 = int_to_ptr.vmem [resolvable:$true] %s47
      %53 = dma.hbm_to_vmem [thread:$0]  %s46, 1024, %s48, [#allocation6], 128, 128, 8
    $region13: #{tpu_custom_call.1} parent=1 // pred_fallthru
      _
    // Predicated region
    $region14: #{tpu_custom_call.1} parent=1 // pred_check
      _
    $region15: #{tpu_custom_call.1} parent=1 // pred_check_branch
      %55 = sbr.rel (0) target = $region17
    $region16: #{tpu_custom_call.1} parent=1 // pred_region
      _
    $region17: #{tpu_custom_call.1} parent=1 // pred_fallthru
      _
    // Predicated region
    $region18: #{tpu_custom_call.1} parent=1 // pred_check
      _
    $region19: #{tpu_custom_call.1} parent=1 // pred_check_branch
      %57 = sbr.rel (0) target = $region21
    $region20: #{tpu_custom_call.1} parent=1 // pred_region
      %59 = vsyncadd [#allocation9], 0
      %s60 = sshll.u32 %s4, 4
      %s61 = int_to_ptr.hbm [resolvable:$true] %s60
      %s62 = sshll.u32 [#allocation8], 4
      %s63 = int_to_ptr.vmem [resolvable:$true] %s62
      %68 = dma.hbm_to_vmem [thread:$0]  %s61, 256, %s63, [#allocation9], 128, 128, 8
    $region21: #{tpu_custom_call.1} parent=1 // pred_fallthru
      _
    // Predicated region
    $region22: #{tpu_custom_call.1} parent=1 // pred_check
      _
    $region23: #{tpu_custom_call.1} parent=1 // pred_check_branch
      %70 = sbr.rel (0) target = $region25
    $region24: #{tpu_custom_call.1} parent=1 // pred_region
      _
    $region25: #{tpu_custom_call.1} parent=1 // pred_fallthru
      _
    // Predicated region
    $region26: #{tpu_custom_call.1} parent=1 // pred_check
      _
    $region27: #{tpu_custom_call.1} parent=1 // pred_check_branch
      %72 = sbr.rel (0) target = $region29
    $region28: #{tpu_custom_call.1} parent=1 // pred_region
      %74 = dma.done [#allocation3], 512
    $region29: #{tpu_custom_call.1} parent=1 // pred_fallthru
      _
    // Predicated region
    $region30: #{tpu_custom_call.1} parent=1 // pred_check
      _
    $region31: #{tpu_custom_call.1} parent=1 // pred_check_branch
      %76 = sbr.rel (0) target = $region33
    $region32: #{tpu_custom_call.1} parent=1 // pred_region
      %78 = dma.done [#allocation6], 2048
    $region33: #{tpu_custom_call.1} parent=1 // pred_fallthru
      _
    // Predicated region
    $region34: #{tpu_custom_call.1} parent=1 // pred_check
      _
    $region35: #{tpu_custom_call.1} parent=1 // pred_check_branch
      %80 = sbr.rel (0) target = $region37
    $region36: #{tpu_custom_call.1} parent=1 // pred_region
      %82 = dma.done [#allocation6], 1024
    $region37: #{tpu_custom_call.1} parent=1 // pred_fallthru
      _
    // Predicated region
    $region38: #{tpu_custom_call.1} parent=1 // pred_check
      _
    $region39: #{tpu_custom_call.1} parent=1 // pred_check_branch
      %84 = sbr.rel (0) target = $region41
    $region40: #{tpu_custom_call.1} parent=1 // pred_region
      %86 = dma.done [#allocation9], 256
    $region41: #{tpu_custom_call.1} parent=1 // pred_fallthru
      _
    %v87 = vld [vmem:[#allocation2] sm:$0xff]
    %v88 = vld [vmem:[#allocation2 + $0x8] sm:$0xff]
    %v89 = vld [vmem:[#allocation2 + $0x10] sm:$0xff]
    %v90 = vld [vmem:[#allocation2 + $0x18] sm:$0xff]
    %v91 = vld [vmem:[%s5] sm:$0xff]
    %v92 = vld [vmem:[%s5 + $0x8] sm:$0xff]
    %v93 = vlaneseq
    %v94 = vand.u32 %v93, 127
    %v95 = vadd.s32 %v94, 128
    %vm96 = vcmp.lt.s32.totalorder %v94, 0
    %v97 = vsub.s32 0, %v94
    %v98 = vsel %vm96, %v97, %v94
    %v99 = vshrl.u32 %v98, 7
    %v100 = vand.u32 %v98, 127
    %v101 = vsub.s32 0, %v100
    %v102 = vsel %vm96, %v101, %v100
    %vm103 = vcmp.lt.s32.totalorder %v95, 0
    %v104 = vsub.s32 0, %v95
    %v105 = vsel %vm103, %v104, %v95
    %v106 = vshrl.u32 %v105, 7
    %v107 = vand.u32 %v105, 127
    %v108 = vsub.s32 0, %v107
    %v109 = vsel %vm103, %v108, %v107
    %vm110 = vcmp.ne.s32.totalorder %v102, 0
    %vm111 = vcmp.ne.s32.totalorder %v109, 0
    %vm112 = vcmp.lt.s32.totalorder %v102, 0
    %vm113 = vcmp.lt.s32.totalorder %v109, 0
    %vm114 = vmand %vm112, %vm110
    %vm115 = vmand %vm113, %vm111
    %v116 = vadd.s32 %v102, 128
    %v117 = vadd.s32 %v109, 128
    %v118 = vsel %vm114, %v116, %v102
    %v119 = vsel %vm115, %v117, %v109
    %v120 = vadd.s32 %v118, 1
    %v121 = vadd.s32 %v119, 1
    %vm122 = vcmp.ge.s32.totalorder %v120, 0
    %vm123 = vcmp.ge.s32.totalorder %v121, 0
    %vm124 = vcmp.lt.s32.totalorder %v120, 128
    %vm125 = vcmp.lt.s32.totalorder %v121, 128
    %vm126 = vmand %vm122, %vm124
    %vm127 = vmand %vm123, %vm125
    %v128 = vadd.s32 %v118, 3
    %v129 = vadd.s32 %v119, 3
    %vm130 = vcmp.ge.s32.totalorder %v128, 0
    %vm131 = vcmp.ge.s32.totalorder %v129, 0
    %vm132 = vcmp.lt.s32.totalorder %v128, 128
    %vm133 = vcmp.lt.s32.totalorder %v129, 128
    %vm134 = vmand %vm130, %vm132
    %vm135 = vmand %vm131, %vm133
    %v136 = vadd.s32 %v118, 4294967293
    %v137 = vadd.s32 %v119, 4294967293
    %vm138 = vcmp.ge.s32.totalorder %v136, 0
    %vm139 = vcmp.ge.s32.totalorder %v137, 0
    %vm140 = vcmp.lt.s32.totalorder %v136, 128
    %vm141 = vcmp.lt.s32.totalorder %v137, 128
    %vm142 = vmand %vm138, %vm140
    %vm143 = vmand %vm139, %vm141
    %v144 = vadd.s32 %v118, 4294967295
    %v145 = vadd.s32 %v119, 4294967295
    %vm146 = vcmp.ge.s32.totalorder %v144, 0
    %vm147 = vcmp.ge.s32.totalorder %v145, 0
    %vm148 = vcmp.lt.s32.totalorder %v144, 128
    %vm149 = vcmp.lt.s32.totalorder %v145, 128
    %vm150 = vmand %vm146, %vm148
    %vm151 = vmand %vm147, %vm149
    %v152 = vld [vmem:[#allocation7] sm:$0xff]
    %v153 = vld [vmem:[#allocation7 + $0x8] sm:$0xff]
    %v154 = vld [vmem:[#allocation7 + $0x10] sm:$0xff]
    %v155 = vld [vmem:[#allocation7 + $0x18] sm:$0xff]
    %v156 = vld [vmem:[#allocation5] sm:$0xff]
    %v157 = vld [vmem:[#allocation5 + $0x8] sm:$0xff]
    %v158 = vld [vmem:[#allocation5 + $0x10] sm:$0xff]
    %v159 = vld [vmem:[#allocation5 + $0x18] sm:$0xff]
    %v160 = vld [vmem:[#allocation5 + $0x20] sm:$0xff]
    %v161 = vld [vmem:[#allocation5 + $0x28] sm:$0xff]
    %v162 = vld [vmem:[#allocation5 + $0x30] sm:$0xff]
    %v163 = vld [vmem:[#allocation5 + $0x38] sm:$0xff]
    %v164 = vld [vmem:[#allocation5 + $0x40] sm:$0xff]
    %v165 = vld [vmem:[#allocation5 + $0x48] sm:$0xff]
    %v166 = vld [vmem:[#allocation5 + $0x50] sm:$0xff]
    %v167 = vld [vmem:[#allocation5 + $0x58] sm:$0xff]
    %v168 = vld [vmem:[#allocation5 + $0x60] sm:$0xff]
    %v169 = vld [vmem:[#allocation5 + $0x68] sm:$0xff]
    %v170 = vld [vmem:[#allocation5 + $0x70] sm:$0x1]
    %v171 = vld [vmem:[#allocation5 + $0x78] sm:$0x1]
    %vm172 = vcmask 465920
    %v174 = vsel %vm172, %v152, 0
    %v177 = vsel %vm172, %v153, 0
    %v180 = vsel %vm172, %v154, 0
    %v183 = vsel %vm172, %v155, 0
    %vm185 = vcmask 1040384
    %v187 = vsel %vm185, %v170, 0
    %v190 = vsel %vm185, %v171, 0
    %192 = vmatpush.msra.mxu0 0.0
    %193 = vmatpush.msra.mxu0 0.0
    %194 = vmatpush.msra.mxu0 0.0
    %195 = vmatpush.msra.mxu0 0.0
    %196 = vmatpush.msra.mxu0 0.0
    %197 = vmatpush.msra.mxu0 0.0
    %198 = vmatpush.msra.mxu0 0.0
    %199 = vmatpush.msra.mxu0 0.0
    %200 = vmatpush.msra.mxu0 %v187
    %201 = vmatpush.msra.mxu0 %v168
    %202 = vmatpush.msra.mxu0 %v166
    %203 = vmatpush.msra.mxu0 %v164
    %204 = vmatpush.msra.mxu0 %v162
    %205 = vmatpush.msra.mxu0 %v160
    %206 = vmatpush.msra.mxu0 %v158
    %207 = vmatpush.msra.mxu0 %v156
    %208 = vmatmul.f32.gmra.mxu0 %v174
    %v209 = vpop.f32.mrf.mxu0
    %v210 = vadd.f32 0.0, %v209
    %211 = vmatmul.f32.gmra.mxu0 %v177
    %v212 = vpop.f32.mrf.mxu0
    %v213 = vadd.f32 0.0, %v212
    %214 = vmatmul.f32.gmra.mxu0 %v180
    %v215 = vpop.f32.mrf.mxu0
    %v216 = vadd.f32 0.0, %v215
    %217 = vmatmul.f32.gmra.mxu0 %v183
    %v218 = vpop.f32.mrf.mxu0
    %v219 = vadd.f32 0.0, %v218
    %220 = vdwg.mxu0
    %221 = vmatpush.msra.mxu0 0.0
    %222 = vmatpush.msra.mxu0 0.0
    %223 = vmatpush.msra.mxu0 0.0
    %224 = vmatpush.msra.mxu0 0.0
    %225 = vmatpush.msra.mxu0 0.0
    %226 = vmatpush.msra.mxu0 0.0
    %227 = vmatpush.msra.mxu0 0.0
    %228 = vmatpush.msra.mxu0 0.0
    %229 = vmatpush.msra.mxu0 %v190
    %230 = vmatpush.msra.mxu0 %v169
    %231 = vmatpush.msra.mxu0 %v167
    %232 = vmatpush.msra.mxu0 %v165
    %233 = vmatpush.msra.mxu0 %v163
    %234 = vmatpush.msra.mxu0 %v161
    %235 = vmatpush.msra.mxu0 %v159
    %236 = vmatpush.msra.mxu0 %v157
    %237 = vmatmul.f32.gmra.mxu0 %v174
    %v238 = vpop.f32.mrf.mxu0
    %v239 = vadd.f32 0.0, %v238
    %240 = vmatmul.f32.gmra.mxu0 %v177
    %v241 = vpop.f32.mrf.mxu0
    %v242 = vadd.f32 0.0, %v241
    %243 = vmatmul.f32.gmra.mxu0 %v180
    %v244 = vpop.f32.mrf.mxu0
    %v245 = vadd.f32 0.0, %v244
    %246 = vmatmul.f32.gmra.mxu0 %v183
    %v247 = vpop.f32.mrf.mxu0
    %v248 = vadd.f32 0.0, %v247
    %249 = vdwg.mxu0
    %v250 = vadd.f32 %v87, %v88
    %251 = vadd.xlane.f32.xlu0 %v250
    %v252 = vpop.xlane.xlu0 %251
    %v253 = vadd.f32 %v89, %v90
    %254 = vadd.xlane.f32.xlu0 %v253
    %v255 = vpop.xlane.xlu0 %254
    %v256 = vmul.f32 %v87, %v87
    %v257 = vmul.f32 %v88, %v88
    %v258 = vmul.f32 %v89, %v89
    %v259 = vmul.f32 %v90, %v90
    %v260 = vadd.f32 %v256, %v257
    %261 = vadd.xlane.f32.xlu0 %v260
    %v262 = vpop.xlane.xlu0 %261
    %v263 = vadd.f32 %v258, %v259
    %264 = vadd.xlane.f32.xlu0 %v263
    %v265 = vpop.xlane.xlu0 %264
    %v266 = vmul.f32 %v252, 0.00390625
    %v267 = vmul.f32 %v255, 0.00390625
    %v268 = vmul.f32 %v262, 0.00390625
    %v269 = vmul.f32 %v265, 0.00390625
    %v270 = vmul.f32 %v266, %v266
    %v271 = vmul.f32 %v267, %v267
    %v272 = vsub.f32 %v268, %v270
    %v273 = vsub.f32 %v269, %v271
    %v274 = vmax.f32 %v272, 0.0
    %v275 = vmax.f32 %v273, 0.0
    %v276 = vadd.f32 %v274, 1e-05
    %v277 = vadd.f32 %v275, 1e-05
    %v278 = vrsqrt.pop %v276
    %v279 = vmul.f32 %v278, %v276
    %v280 = vmul.f32 %v279, %v278
    %v281 = vmul.f32 0.5, %v280
    %v282 = vsub.f32 1.5, %v281
    %v283 = vmul.f32 %v278, %v282
    %vm284 = vweird.f32 %v276
    %vm285 = vweird.f32 %v278
    %vm286 = vmor %vm284, %vm285
    %v287 = vsel %vm286, %v278, %v283
    %v288 = vrsqrt.pop %v277
    %v289 = vmul.f32 %v288, %v277
    %v290 = vmul.f32 %v289, %v288
    %v291 = vmul.f32 0.5, %v290
    %v292 = vsub.f32 1.5, %v291
    %v293 = vmul.f32 %v288, %v292
    %vm294 = vweird.f32 %v277
    %vm295 = vweird.f32 %v288
    %vm296 = vmor %vm294, %vm295
    %v297 = vsel %vm296, %v288, %v293
    %v298 = vmul.f32 %v91, %v287
    %v299 = vmul.f32 %v92, %v297
    %301 = vset.pattern.permute.xlu0 0
    %302 = vperm.xlu0 %301, %v298
    %v303 = vpop.permute.xlu0 %302
    %306 = vset.pattern.permute.xlu0 0
    %307 = vperm.xlu0 %306, %v299
    %v308 = vpop.permute.xlu0 %307
    %v310 = vmul.f32 %v87, %v303
    %v311 = vmul.f32 %v88, %v303
    %v312 = vmul.f32 %v89, %v308
    %v313 = vmul.f32 %v90, %v308
    %v314 = vmul.f32 %v266, %v298
    %v315 = vmul.f32 %v267, %v299
    %318 = vrot.lane.b32.xlu0 %v314, 1
    %v319 = vpop.permute.xlu0 %318
    %320 = vrot.lane.b32.xlu0 %v315, 1
    %v321 = vpop.permute.xlu0 %320
    %v324 = vsub.f32 %v91, %v319
    %v325 = vsub.f32 %v92, %v321
    %327 = vset.pattern.permute.xlu0 1
    %328 = vperm.xlu0 %327, %v324
    %v329 = vpop.permute.xlu0 %328
    %332 = vset.pattern.permute.xlu0 1
    %333 = vperm.xlu0 %332, %v325
    %v334 = vpop.permute.xlu0 %333
    %v336 = vadd.f32 %v310, %v329
    %v337 = vadd.f32 %v311, %v329
    %v338 = vadd.f32 %v312, %v334
    %v339 = vadd.f32 %v313, %v334
    %v340 = vmul.f32 %v210, %v336
    %v341 = vmul.f32 %v239, %v337
    %v342 = vmul.f32 %v213, %v338
    %v343 = vmul.f32 %v242, %v339
    %v344 = vadd.f32 %v340, %v216
    %v345 = vadd.f32 %v341, %v245
    %v346 = vadd.f32 %v342, %v219
    %v347 = vadd.f32 %v343, %v248
    %v348 = vmax.f32 %v344, 0.0
    %v349 = vmax.f32 %v345, 0.0
    %v350 = vmax.f32 %v346, 0.0
    %v351 = vmax.f32 %v347, 0.0
    %352 = vrot.lane.b32.xlu0 %v348, 1
    %v353 = vpop.permute.xlu0 %352
    %354 = vrot.lane.b32.xlu0 %v350, 1
    %v355 = vpop.permute.xlu0 %354
    %356 = vrot.lane.b32.xlu0 %v349, 1
    %v357 = vpop.permute.xlu0 %356
    %358 = vrot.lane.b32.xlu0 %v351, 1
    %v359 = vpop.permute.xlu0 %358
    %vm360 = vcmp.lt.s32.totalorder %v94, 1
    %v361 = vsel %vm360, %v353, %v357
    %v362 = vsel %vm360, %v355, %v359
    %v363 = vsel %vm360, %v357, %v353
    %v364 = vsel %vm360, %v359, %v355
    %v365 = vsel %vm150, 1, 0
    %v366 = vsel %vm151, 1, 0
    %vm367 = vcmp.eq.s32.totalorder %v365, 1
    %vm368 = vcmp.eq.s32.totalorder %v366, 1
    %v369 = vsel %vm367, %v363, 0.0
    %v370 = vsel %vm368, %v361, 0.0
    %v371 = vsel %vm367, %v364, 0.0
    %v372 = vsel %vm368, %v362, 0.0
    %373 = vrot.lane.b32.xlu0 %v348, 127
    %v374 = vpop.permute.xlu0 %373
    %375 = vrot.lane.b32.xlu0 %v350, 127
    %v376 = vpop.permute.xlu0 %375
    %377 = vrot.lane.b32.xlu0 %v349, 127
    %v378 = vpop.permute.xlu0 %377
    %379 = vrot.lane.b32.xlu0 %v351, 127
    %v380 = vpop.permute.xlu0 %379
    %vm381 = vcmp.lt.s32.totalorder %v94, 127
    %v382 = vsel %vm381, %v374, %v378
    %v383 = vsel %vm381, %v376, %v380
    %v384 = vsel %vm381, %v378, %v374
    %v385 = vsel %vm381, %v380, %v376
    %v386 = vsel %vm126, 1, 0
    %v387 = vsel %vm127, 1, 0
    %vm388 = vcmp.eq.s32.totalorder %v386, 1
    %vm389 = vcmp.eq.s32.totalorder %v387, 1
    %v390 = vsel %vm388, %v382, 0.0
    %v391 = vsel %vm389, %v384, 0.0
    %v392 = vsel %vm388, %v383, 0.0
    %v393 = vsel %vm389, %v385, 0.0
    %v394 = vld [vmem:[%s3] sm:$0xff]
    %v395 = vld [vmem:[%s3 + $0x8] sm:$0xff]
    %vm396 = vcmask 400384
    %v398 = vsel %vm396, %v394, 0
    %v401 = vsel %vm396, %v395, 0
    %v404 = vsel %vm185, 1.0, 0
    %406 = vmatpush.msra.mxu0 0.0
    %407 = vmatpush.msra.mxu0 0.0
    %408 = vmatpush.msra.mxu0 0.0
    %409 = vmatpush.msra.mxu0 0.0
    %410 = vmatpush.msra.mxu0 0.0
    %411 = vmatpush.msra.mxu0 0.0
    %412 = vmatpush.msra.mxu0 0.0
    %413 = vmatpush.msra.mxu0 0.0
    %414 = vmatpush.msra.mxu0 0.0
    %415 = vmatpush.msra.mxu0 %v404
    %416 = vmatpush.msra.mxu0 %v392
    %417 = vmatpush.msra.mxu0 %v390
    %418 = vmatpush.msra.mxu0 %v350
    %419 = vmatpush.msra.mxu0 %v348
    %420 = vmatpush.msra.mxu0 %v371
    %421 = vmatpush.msra.mxu0 %v369
    %422 = vmatmul.f32.gmra.mxu0 %v398
    %v423 = vpop.f32.mrf.mxu0
    %v424 = vadd.f32 0.0, %v423
    %425 = vmatmul.f32.gmra.mxu0 %v401
    %v426 = vpop.f32.mrf.mxu0
    %v427 = vadd.f32 0.0, %v426
    %428 = vdwg.mxu0
    %429 = vmatpush.msra.mxu0 0.0
    %430 = vmatpush.msra.mxu0 0.0
    %431 = vmatpush.msra.mxu0 0.0
    %432 = vmatpush.msra.mxu0 0.0
    %433 = vmatpush.msra.mxu0 0.0
    %434 = vmatpush.msra.mxu0 0.0
    %435 = vmatpush.msra.mxu0 0.0
    %436 = vmatpush.msra.mxu0 0.0
    %437 = vmatpush.msra.mxu0 0.0
    %438 = vmatpush.msra.mxu0 %v404
    %439 = vmatpush.msra.mxu0 %v393
    %440 = vmatpush.msra.mxu0 %v391
    %441 = vmatpush.msra.mxu0 %v351
    %442 = vmatpush.msra.mxu0 %v349
    %443 = vmatpush.msra.mxu0 %v372
    %444 = vmatpush.msra.mxu0 %v370
    %445 = vmatmul.f32.gmra.mxu0 %v398
    %v446 = vpop.f32.mrf.mxu0
    %v447 = vadd.f32 0.0, %v446
    %448 = vmatmul.f32.gmra.mxu0 %v401
    %v449 = vpop.f32.mrf.mxu0
    %v450 = vadd.f32 0.0, %v449
    %451 = vdwg.mxu0
    %v452 = vld [vmem:[#allocation7 + $0x20] sm:$0xff]
    %v453 = vld [vmem:[#allocation7 + $0x28] sm:$0xff]
    %v454 = vld [vmem:[#allocation7 + $0x30] sm:$0xff]
    %v455 = vld [vmem:[#allocation7 + $0x38] sm:$0xff]
    %v457 = vsel %vm172, %v452, 0
    %v460 = vsel %vm172, %v453, 0
    %v463 = vsel %vm172, %v454, 0
    %v466 = vsel %vm172, %v455, 0
    %468 = vmatpush.msra.mxu0 0.0
    %469 = vmatpush.msra.mxu0 0.0
    %470 = vmatpush.msra.mxu0 0.0
    %471 = vmatpush.msra.mxu0 0.0
    %472 = vmatpush.msra.mxu0 0.0
    %473 = vmatpush.msra.mxu0 0.0
    %474 = vmatpush.msra.mxu0 0.0
    %475 = vmatpush.msra.mxu0 0.0
    %476 = vmatpush.msra.mxu0 %v187
    %477 = vmatpush.msra.mxu0 %v168
    %478 = vmatpush.msra.mxu0 %v166
    %479 = vmatpush.msra.mxu0 %v164
    %480 = vmatpush.msra.mxu0 %v162
    %481 = vmatpush.msra.mxu0 %v160
    %482 = vmatpush.msra.mxu0 %v158
    %483 = vmatpush.msra.mxu0 %v156
    %484 = vmatmul.f32.gmra.mxu0 %v457
    %v485 = vpop.f32.mrf.mxu0
    %v486 = vadd.f32 0.0, %v485
    %487 = vmatmul.f32.gmra.mxu0 %v460
    %v488 = vpop.f32.mrf.mxu0
    %v489 = vadd.f32 0.0, %v488
    %490 = vmatmul.f32.gmra.mxu0 %v463
    %v491 = vpop.f32.mrf.mxu0
    %v492 = vadd.f32 0.0, %v491
    %493 = vmatmul.f32.gmra.mxu0 %v466
    %v494 = vpop.f32.mrf.mxu0
    %v495 = vadd.f32 0.0, %v494
    %496 = vdwg.mxu0
    %497 = vmatpush.msra.mxu0 0.0
    %498 = vmatpush.msra.mxu0 0.0
    %499 = vmatpush.msra.mxu0 0.0
    %500 = vmatpush.msra.mxu0 0.0
    %501 = vmatpush.msra.mxu0 0.0
    %502 = vmatpush.msra.mxu0 0.0
    %503 = vmatpush.msra.mxu0 0.0
    %504 = vmatpush.msra.mxu0 0.0
    %505 = vmatpush.msra.mxu0 %v190
    %506 = vmatpush.msra.mxu0 %v169
    %507 = vmatpush.msra.mxu0 %v167
    %508 = vmatpush.msra.mxu0 %v165
    %509 = vmatpush.msra.mxu0 %v163
    %510 = vmatpush.msra.mxu0 %v161
    %511 = vmatpush.msra.mxu0 %v159
    %512 = vmatpush.msra.mxu0 %v157
    %513 = vmatmul.f32.gmra.mxu0 %v457
    %v514 = vpop.f32.mrf.mxu0
    %v515 = vadd.f32 0.0, %v514
    %516 = vmatmul.f32.gmra.mxu0 %v460
    %v517 = vpop.f32.mrf.mxu0
    %v518 = vadd.f32 0.0, %v517
    %519 = vmatmul.f32.gmra.mxu0 %v463
    %v520 = vpop.f32.mrf.mxu0
    %v521 = vadd.f32 0.0, %v520
    %522 = vmatmul.f32.gmra.mxu0 %v466
    %v523 = vpop.f32.mrf.mxu0
    %v524 = vadd.f32 0.0, %v523
    %525 = vdwg.mxu0
    %v526 = vadd.f32 %v424, %v447
    %527 = vadd.xlane.f32.xlu0 %v526
    %v528 = vpop.xlane.xlu0 %527
    %v529 = vadd.f32 %v427, %v450
    %530 = vadd.xlane.f32.xlu0 %v529
    %v531 = vpop.xlane.xlu0 %530
    %v532 = vmul.f32 %v424, %v424
    %v533 = vmul.f32 %v447, %v447
    %v534 = vmul.f32 %v427, %v427
    %v535 = vmul.f32 %v450, %v450
    %v536 = vadd.f32 %v532, %v533
    %537 = vadd.xlane.f32.xlu0 %v536
    %v538 = vpop.xlane.xlu0 %537
    %v539 = vadd.f32 %v534, %v535
    %540 = vadd.xlane.f32.xlu0 %v539
    %v541 = vpop.xlane.xlu0 %540
    %v542 = vmul.f32 %v528, 0.00390625
    %v543 = vmul.f32 %v531, 0.00390625
    %v544 = vmul.f32 %v538, 0.00390625
    %v545 = vmul.f32 %v541, 0.00390625
    %v546 = vmul.f32 %v542, %v542
    %v547 = vmul.f32 %v543, %v543
    %v548 = vsub.f32 %v544, %v546
    %v549 = vsub.f32 %v545, %v547
    %v550 = vmax.f32 %v548, 0.0
    %v551 = vmax.f32 %v549, 0.0
    %v552 = vadd.f32 %v550, 1e-05
    %v553 = vadd.f32 %v551, 1e-05
    %v554 = vrsqrt.pop %v552
    %v555 = vmul.f32 %v554, %v552
    %v556 = vmul.f32 %v555, %v554
    %v557 = vmul.f32 0.5, %v556
    %v558 = vsub.f32 1.5, %v557
    %v559 = vmul.f32 %v554, %v558
    %vm560 = vweird.f32 %v552
    %vm561 = vweird.f32 %v554
    %vm562 = vmor %vm560, %vm561
    %v563 = vsel %vm562, %v554, %v559
    %v564 = vrsqrt.pop %v553
    %v565 = vmul.f32 %v564, %v553
    %v566 = vmul.f32 %v565, %v564
    %v567 = vmul.f32 0.5, %v566
    %v568 = vsub.f32 1.5, %v567
    %v569 = vmul.f32 %v564, %v568
    %vm570 = vweird.f32 %v553
    %vm571 = vweird.f32 %v564
    %vm572 = vmor %vm570, %vm571
    %v573 = vsel %vm572, %v564, %v569
    %v574 = vmul.f32 %v91, %v563
    %v575 = vmul.f32 %v92, %v573
    %577 = vset.pattern.permute.xlu0 2
    %578 = vperm.xlu0 %577, %v574
    %v579 = vpop.permute.xlu0 %578
    %582 = vset.pattern.permute.xlu0 2
    %583 = vperm.xlu0 %582, %v575
    %v584 = vpop.permute.xlu0 %583
    %v586 = vmul.f32 %v424, %v579
    %v587 = vmul.f32 %v447, %v579
    %v588 = vmul.f32 %v427, %v584
    %v589 = vmul.f32 %v450, %v584
    %v590 = vmul.f32 %v542, %v574
    %v591 = vmul.f32 %v543, %v575
    %594 = vrot.lane.b32.xlu0 %v590, 1
    %v595 = vpop.permute.xlu0 %594
    %596 = vrot.lane.b32.xlu0 %v591, 1
    %v597 = vpop.permute.xlu0 %596
    %v600 = vsub.f32 %v91, %v595
    %v601 = vsub.f32 %v92, %v597
    %603 = vset.pattern.permute.xlu0 3
    %604 = vperm.xlu0 %603, %v600
    %v605 = vpop.permute.xlu0 %604
    %608 = vset.pattern.permute.xlu0 3
    %609 = vperm.xlu0 %608, %v601
    %v610 = vpop.permute.xlu0 %609
    %v612 = vadd.f32 %v586, %v605
    %v613 = vadd.f32 %v587, %v605
    %v614 = vadd.f32 %v588, %v610
    %v615 = vadd.f32 %v589, %v610
    %v616 = vmul.f32 %v486, %v612
    %v617 = vmul.f32 %v515, %v613
    %v618 = vmul.f32 %v489, %v614
    %v619 = vmul.f32 %v518, %v615
    %v620 = vadd.f32 %v616, %v492
    %v621 = vadd.f32 %v617, %v521
    %v622 = vadd.f32 %v618, %v495
    %v623 = vadd.f32 %v619, %v524
    %v624 = vmax.f32 %v620, 0.0
    %v625 = vmax.f32 %v621, 0.0
    %v626 = vmax.f32 %v622, 0.0
    %v627 = vmax.f32 %v623, 0.0
    %628 = vrot.lane.b32.xlu0 %v624, 3
    %v629 = vpop.permute.xlu0 %628
    %630 = vrot.lane.b32.xlu0 %v626, 3
    %v631 = vpop.permute.xlu0 %630
    %632 = vrot.lane.b32.xlu0 %v625, 3
    %v633 = vpop.permute.xlu0 %632
    %634 = vrot.lane.b32.xlu0 %v627, 3
    %v635 = vpop.permute.xlu0 %634
    %vm636 = vcmp.lt.s32.totalorder %v94, 3
    %v637 = vsel %vm636, %v629, %v633
    %v638 = vsel %vm636, %v631, %v635
    %v639 = vsel %vm636, %v633, %v629
    %v640 = vsel %vm636, %v635, %v631
    %v641 = vsel %vm142, 1, 0
    %v642 = vsel %vm143, 1, 0
    %vm643 = vcmp.eq.s32.totalorder %v641, 1
    %vm644 = vcmp.eq.s32.totalorder %v642, 1
    %v645 = vsel %vm643, %v639, 0.0
    %v646 = vsel %vm644, %v637, 0.0
    %v647 = vsel %vm643, %v640, 0.0
    %v648 = vsel %vm644, %v638, 0.0
    %649 = vrot.lane.b32.xlu0 %v624, 125
    %v650 = vpop.permute.xlu0 %649
    %651 = vrot.lane.b32.xlu0 %v626, 125
    %v652 = vpop.permute.xlu0 %651
    %653 = vrot.lane.b32.xlu0 %v625, 125
    %v654 = vpop.permute.xlu0 %653
    %655 = vrot.lane.b32.xlu0 %v627, 125
    %v656 = vpop.permute.xlu0 %655
    %vm657 = vcmp.lt.s32.totalorder %v94, 125
    %v658 = vsel %vm657, %v650, %v654
    %v659 = vsel %vm657, %v652, %v656
    %v660 = vsel %vm657, %v654, %v650
    %v661 = vsel %vm657, %v656, %v652
    %v662 = vsel %vm134, 1, 0
    %v663 = vsel %vm135, 1, 0
    %vm664 = vcmp.eq.s32.totalorder %v662, 1
    %vm665 = vcmp.eq.s32.totalorder %v663, 1
    %v666 = vsel %vm664, %v658, 0.0
    %v667 = vsel %vm665, %v660, 0.0
    %v668 = vsel %vm664, %v659, 0.0
    %v669 = vsel %vm665, %v661, 0.0
    %v670 = vld [vmem:[#allocation8] sm:$0xff]
    %v671 = vld [vmem:[#allocation8 + $0x8] sm:$0xff]
    %v673 = vsel %vm396, %v670, 0
    %v676 = vsel %vm396, %v671, 0
    %678 = vmatpush.msra.mxu0 0.0
    %679 = vmatpush.msra.mxu0 0.0
    %680 = vmatpush.msra.mxu0 0.0
    %681 = vmatpush.msra.mxu0 0.0
    %682 = vmatpush.msra.mxu0 0.0
    %683 = vmatpush.msra.mxu0 0.0
    %684 = vmatpush.msra.mxu0 0.0
    %685 = vmatpush.msra.mxu0 0.0
    %686 = vmatpush.msra.mxu0 0.0
    %687 = vmatpush.msra.mxu0 %v404
    %688 = vmatpush.msra.mxu0 %v668
    %689 = vmatpush.msra.mxu0 %v666
    %690 = vmatpush.msra.mxu0 %v626
    %691 = vmatpush.msra.mxu0 %v624
    %692 = vmatpush.msra.mxu0 %v647
    %693 = vmatpush.msra.mxu0 %v645
    %694 = vmatmul.f32.gmra.mxu0 %v673
    %v695 = vpop.f32.mrf.mxu0
    %v696 = vadd.f32 %v87, %v695
    %697 = vmatmul.f32.gmra.mxu0 %v676
    %v698 = vpop.f32.mrf.mxu0
    %v699 = vadd.f32 %v89, %v698
    %700 = vdwg.mxu0
    %701 = vmatpush.msra.mxu0 0.0
    %702 = vmatpush.msra.mxu0 0.0
    %703 = vmatpush.msra.mxu0 0.0
    %704 = vmatpush.msra.mxu0 0.0
    %705 = vmatpush.msra.mxu0 0.0
    %706 = vmatpush.msra.mxu0 0.0
    %707 = vmatpush.msra.mxu0 0.0
    %708 = vmatpush.msra.mxu0 0.0
    %709 = vmatpush.msra.mxu0 0.0
    %710 = vmatpush.msra.mxu0 %v404
    %711 = vmatpush.msra.mxu0 %v669
    %712 = vmatpush.msra.mxu0 %v667
    %713 = vmatpush.msra.mxu0 %v627
    %714 = vmatpush.msra.mxu0 %v625
    %715 = vmatpush.msra.mxu0 %v648
    %716 = vmatpush.msra.mxu0 %v646
    %717 = vmatmul.f32.gmra.mxu0 %v673
    %v718 = vpop.f32.mrf.mxu0
    %v719 = vadd.f32 %v88, %v718
    %720 = vmatmul.f32.gmra.mxu0 %v676
    %v721 = vpop.f32.mrf.mxu0
    %v722 = vadd.f32 %v90, %v721
    %723 = vdwg.mxu0
    %724 = vst [vmem:[#allocation10] sm:$0xff] %v696
    %725 = vst [vmem:[#allocation10 + $0x8] sm:$0xff] %v719
    %726 = vst [vmem:[#allocation10 + $0x10] sm:$0xff] %v699
    %727 = vst [vmem:[#allocation10 + $0x18] sm:$0xff] %v722
    // Predicated region
    $region42: #{tpu_custom_call.1} parent=1 // pred_check
      _
    $region43: #{tpu_custom_call.1} parent=1 // pred_check_branch
      %729 = sbr.rel (0) target = $region45
    $region44: #{tpu_custom_call.1} parent=1 // pred_region
      %731 = vsyncadd [#allocation4], 0
      %s732 = sshll.u32 [#allocation10], 4
      %s733 = int_to_ptr.vmem [resolvable:$true] %s732
      %s734 = sshll.u32 %s6, 4
      %s735 = int_to_ptr.hbm [resolvable:$true] %s734
      %740 = dma.vmem_to_hbm [thread:$0]  %s733, 512, %s735, [#allocation4], 256, 256, 16
    $region45: #{tpu_custom_call.1} parent=1 // pred_fallthru
      _
    // Predicated region
    $region46: #{tpu_custom_call.1} parent=1 // pred_check
      _
    $region47: #{tpu_custom_call.1} parent=1 // pred_check_branch
      %742 = sbr.rel (0) target = $region49
    $region48: #{tpu_custom_call.1} parent=1 // pred_region
      %744 = dma.done [#allocation4], 512
    $region49: #{tpu_custom_call.1} parent=1 // pred_fallthru
      _
    %745 = vsyncpa [#allocation3], 1
    %746 = vsyncpa [#allocation6], 1
    %747 = vsyncpa [#allocation9], 1
    %748 = vsyncpa [#allocation4], 1

</llo_original>
